<compile_context>
chip_gen: v6e
topology: v6e:2x2x1
jax: 0.10.0
libtpu: 0.0.40
codegen_flags: <defaults>
</compile_context>

<pallas_src>
import functools
import math

import jax
import jax.numpy as jnp
from jax.experimental import pallas as pl
from jax.experimental.pallas import tpu as pltpu


def _mask_predict_kernel(x_ref, wt_ref, b_ref, o_ref, *, valid_cols, num_matmuls):
    """log_softmax over the last axis of ((x @ Wt + b) [@ Wt + b]) for one row tile.

    x_ref:  (TM, Hp)  f32
    wt_ref: (Hp, Hp)  matmul dtype (bf16 by default), already laid out (in, out)
    b_ref:  (1, Hp)   f32
    o_ref:  (TM, Hp)  f32
    """
    x = x_ref[...]
    w = wt_ref[...]                      # already the MXU dtype (cast in wrapper)
    b = b_ref[...]

    # First (and possibly only) matmul, f32 accumulation on the MXU.
    h = jnp.dot(x.astype(w.dtype), w, preferred_element_type=jnp.float32) + b
    if num_matmuls == 2:                 # same Linear applied a second time
        h = jnp.dot(h.astype(w.dtype), w, preferred_element_type=jnp.float32) + b

    if valid_cols is not None:
        # Feature dim was padded to a multiple of 128: mask the padded columns
        # out of the softmax with a large negative (exp -> 0).
        col = jax.lax.broadcasted_iota(jnp.int32, h.shape, 1)
        h = jnp.where(col < valid_cols, h, -1e30)

    # LogSoftmax over the last (lane) axis, all in f32 on the VPU/EUP.
    m = jnp.max(h, axis=-1, keepdims=True)
    z = h - m
    lse = jnp.log(jnp.sum(jnp.exp(z), axis=-1, keepdims=True))
    o_ref[...] = (z - lse).astype(o_ref.dtype)


def _round_up(x, n):
    return ((x + n - 1) // n) * n


def _pick_block_rows(m, hp, weight_bytes, budget_bytes=40 << 20):
    """Row-tile size: ~8 live f32 (tm, hp) slabs (2x double-buffered x tiles,
    2x out tiles, softmax intermediates) plus the single-buffered resident
    weight must fit the smallest per-core VMEM (v7x: 64 MiB)."""
    per_row = 8 * hp * 4
    avail = max(budget_bytes - weight_bytes, per_row * 128)
    tm = min(1024, avail // per_row)
    tm = max(128, (tm // 128) * 128)          # 128-aligned: MXU-friendly on all gens
    return int(min(tm, _round_up(m, 8)))      # never exceed the (8-rounded) row count


def mask_predict(x, weight, bias, *, block_rows=None,
                 matmul_dtype=jnp.bfloat16, prefuse=False):
    """MaskPredict.forward.

    x:            (..., H)
    weight:       (H, H)  PyTorch nn.Linear layout (out_features, in_features)
    bias:         (H,)
    matmul_dtype: dtype of the MXU operands (accumulation & softmax stay f32).
    prefuse:      fold the two identical Linears into one matmul
                  (W2 = Wt @ Wt, b_eff = b @ Wt + b); numerically equivalent up
                  to float rounding, halves in-kernel MXU FLOPs.
    """
    orig_shape = x.shape
    H = orig_shape[-1]
    assert weight.shape == (H, H), weight.shape
    assert bias.shape == (H,), bias.shape

    M = math.prod(orig_shape[:-1])
    Hp = _round_up(max(H, 128), 128)          # lane-dense feature dim

    x2 = x.reshape(M, H).astype(jnp.float32)
    wt = jnp.asarray(weight, jnp.float32).T   # (in, out): kernel computes x @ wt
    b2 = jnp.asarray(bias, jnp.float32).reshape(1, H)

    if prefuse:
        # (x@Wt + b)@Wt + b == x@(Wt@Wt) + (b@Wt + b): one-time f32 precompute.
        b2 = jnp.dot(b2, wt, precision=jax.lax.Precision.HIGHEST) + b2
        wt = jnp.dot(wt, wt, precision=jax.lax.Precision.HIGHEST)
    num_matmuls = 1 if prefuse else 2

    if Hp != H:                               # zero-pad features to 128 lanes
        x2 = jnp.pad(x2, ((0, 0), (0, Hp - H)))
        wt = jnp.pad(wt, ((0, Hp - H), (0, Hp - H)))
        b2 = jnp.pad(b2, ((0, 0), (0, Hp - H)))

    wt = wt.astype(matmul_dtype)              # cast ONCE, outside the kernel
    w_bytes = Hp * Hp * wt.dtype.itemsize

    if block_rows is None:
        tm = _pick_block_rows(M, Hp, w_bytes)
    else:
        tm = int(min(max(8, (block_rows // 8) * 8), _round_up(M, 8)))
    grid = (pl.cdiv(M, tm),)                  # ragged last tile handled by Pallas

    kernel = functools.partial(
        _mask_predict_kernel,
        valid_cols=H if Hp != H else None,
        num_matmuls=num_matmuls,
    )

    cost = pl.CostEstimate(
        flops=2 * num_matmuls * M * Hp * Hp,
        transcendentals=M * Hp + M,                         # exp per elem + log per row
        bytes_accessed=2 * M * Hp * 4 + w_bytes + Hp * 4,   # x + out + W + bias
    )

    out = pl.pallas_call(
        kernel,
        out_shape=jax.ShapeDtypeStruct((M, Hp), jnp.float32),
        grid_spec=pltpu.PrefetchScalarGridSpec(
            num_scalar_prefetch=0,
            grid=grid,
            in_specs=[
                # Row tile of x.
                pl.BlockSpec((tm, Hp), lambda i: (i, 0)),
                # Weight + bias: constant index_map -> VMEM-resident; single-
                # buffered so the constant operand is not allocated twice.
                pl.BlockSpec((Hp, Hp), lambda i: (0, 0),
                             pipeline_mode=pl.Buffered(1)),
                pl.BlockSpec((1, Hp), lambda i: (0, 0),
                             pipeline_mode=pl.Buffered(1)),
            ],
            out_specs=pl.BlockSpec((tm, Hp), lambda i: (i, 0)),
        ),
        compiler_params=pltpu.CompilerParams(
            dimension_semantics=("parallel",),      # Megacore-shardable row grid
            vmem_limit_bytes=64 * 1024 * 1024,
        ),
        cost_estimate=cost,
    )(x2, wt, b2)

    # TODO(synk): for H > ~6K, add a second grid axis tiling the weight's output
    # columns instead of keeping the full (Hp, Hp) block VMEM-resident.

    return out[:, :H].reshape(orig_shape)


def init_params(key, hidden, vocab_size):
    """Mirror PyTorch nn.Linear default init: U(-1/sqrt(in), 1/sqrt(in))."""
    k1, k2, k3, k4 = jax.random.split(key, 4)
    bound = 1.0 / math.sqrt(hidden)
    w = jax.random.uniform(k1, (hidden, hidden), jnp.float32, -bound, bound)
    b = jax.random.uniform(k2, (hidden,), jnp.float32, -bound, bound)
    # linear1 (hidden -> vocab_size) exists in __init__ but is never used in
    # forward(); created here only for parameter-shape fidelity.
    w1 = jax.random.uniform(k3, (vocab_size, hidden), jnp.float32, -bound, bound)
    b1 = jax.random.uniform(k4, (vocab_size,), jnp.float32, -bound, bound)
    return {"linear": {"w": w, "b": b}, "linear1": {"w": w1, "b": b1}}


def _reference(x, w, b):
    """Pure-JAX f32 reference of the PyTorch forward (correctness check)."""
    hi = jax.lax.Precision.HIGHEST
    h = jnp.dot(x, w.T, precision=hi) + b
    h = jnp.dot(h, w.T, precision=hi) + b
    return jax.nn.log_softmax(h, axis=-1)


if __name__ == "__main__":
    B, S, hidden, vocab_size = 2, 8, 32, 16

    key = jax.random.PRNGKey(0)
    kx, kp = jax.random.split(key)
    x = jax.random.normal(kx, (B, S, hidden), jnp.float32)
    params = init_params(kp, hidden, vocab_size)
    w, b = params["linear"]["w"], params["linear"]["b"]

    expected = _reference(x, w, b)

    # Default config: bf16 MXU operands, fully fused double matmul + log-softmax.
    out = jax.block_until_ready(mask_predict(x, w, b))
    assert out.shape == (B, S, hidden), out.shape
    assert bool(jnp.all(jnp.isfinite(out)))
    assert bool(jnp.allclose(out, expected, atol=2e-2, rtol=2e-2)), \
        float(jnp.max(jnp.abs(out - expected)))
    # log-probabilities: each row exponentiates-and-sums to 1
    row_sum = jnp.exp(jax.scipy.special.logsumexp(out, axis=-1))
    assert bool(jnp.allclose(row_sum, 1.0, atol=1e-3))

    # f32 MXU operands: tighter agreement with the f32 reference.
    out_f32 = jax.block_until_ready(mask_predict(x, w, b, matmul_dtype=jnp.float32))
    assert bool(jnp.allclose(out_f32, expected, atol=5e-3, rtol=5e-3)), \
        float(jnp.max(jnp.abs(out_f32 - expected)))

    # Prefused single-matmul variant (W2 = Wt@Wt, b_eff = b@Wt + b).
    out_fused = jax.block_until_ready(
        mask_predict(x, w, b, matmul_dtype=jnp.float32, prefuse=True))
    assert bool(jnp.allclose(out_fused, expected, atol=5e-3, rtol=5e-3)), \
        float(jnp.max(jnp.abs(out_fused - expected)))

    print("KERNEL_OK")
</pallas_src>

<mosaic_0001>
module attributes {stable_mosaic.version = 11 : i64} {
  func.func @_mask_predict_kernel(%arg0: i32, %arg1: memref<16x128xf32, #tpu.memory_space<vmem>>, %arg2: memref<128x128xbf16, #tpu.memory_space<vmem>>, %arg3: memref<1x128xf32, #tpu.memory_space<vmem>>, %arg4: memref<16x128xf32, #tpu.memory_space<vmem>>) attributes {dimension_semantics = [#tpu.dimension_semantics<parallel>], iteration_bounds = array<i64: 1>, scalar_prefetch = 0 : i64, scratch_operands = 0 : i64, tpu.core_type = #tpu.core_type<tc>, window_params = [{transform_indices = @transform_0, window_bounds = array<i64: 16, 128>}, {pipeline_mode = #tpu.pipeline_mode<synchronous>, transform_indices = @transform_1, window_bounds = array<i64: 128, 128>}, {pipeline_mode = #tpu.pipeline_mode<synchronous>, transform_indices = @transform_2, window_bounds = array<i64: 1, 128>}, {transform_indices = @transform_3, window_bounds = array<i64: 16, 128>}]} {
    %c0 = arith.constant 0 : index
    %c0_0 = arith.constant 0 : index
    %0 = vector.load %arg1[%c0, %c0_0] : memref<16x128xf32, #tpu.memory_space<vmem>>, vector<16x128xf32>
    %c0_1 = arith.constant 0 : index
    %c0_2 = arith.constant 0 : index
    %1 = vector.load %arg2[%c0_1, %c0_2] : memref<128x128xbf16, #tpu.memory_space<vmem>>, vector<128x128xbf16>
    %c0_3 = arith.constant 0 : index
    %c0_4 = arith.constant 0 : index
    %2 = vector.load %arg3[%c0_3, %c0_4] : memref<1x128xf32, #tpu.memory_space<vmem>>, vector<1x128xf32>
    %3 = arith.truncf %0 : vector<16x128xf32> to vector<16x128xbf16>
    %cst = arith.constant dense<0.000000e+00> : vector<16x128xf32>
    %4 = tpu.matmul %3, %1, %cst {dimension_numbers = #tpu.dot_dimension_numbers<[1], [0], [0], [1], [0, 0, 1, 1], [], []>} : vector<16x128xbf16>, vector<128x128xbf16>, vector<16x128xf32> -> vector<16x128xf32>
    %5 = vector.broadcast %2 : vector<1x128xf32> to vector<16x128xf32>
    %6 = arith.addf %4, %5 : vector<16x128xf32>
    %7 = arith.truncf %6 : vector<16x128xf32> to vector<16x128xbf16>
    %cst_5 = arith.constant dense<0.000000e+00> : vector<16x128xf32>
    %8 = tpu.matmul %7, %1, %cst_5 {dimension_numbers = #tpu.dot_dimension_numbers<[1], [0], [0], [1], [0, 0, 1, 1], [], []>} : vector<16x128xbf16>, vector<128x128xbf16>, vector<16x128xf32> -> vector<16x128xf32>
    %9 = vector.broadcast %2 : vector<1x128xf32> to vector<16x128xf32>
    %10 = arith.addf %8, %9 : vector<16x128xf32>
    %11 = tpu.iota {dimensions = array<i32: 1>} : vector<16x128xi32>
    %c32_i32 = arith.constant 32 : i32
    %12 = vector.broadcast %c32_i32 : i32 to vector<16x128xi32>
    %13 = arith.cmpi slt, %11, %12 : vector<16x128xi32>
    %cst_6 = arith.constant -1.000000e+30 : f32
    %14 = vector.broadcast %cst_6 : f32 to vector<16x128xf32>
    %15 = arith.select %13, %10, %14 : vector<16x128xi1>, vector<16x128xf32>
    %cst_7 = arith.constant dense<0xFF800000> : vector<16xf32>
    %16 = vector.multi_reduction <maximumf>, %15, %cst_7 [1] : vector<16x128xf32> to vector<16xf32>
    %17 = vector.shape_cast %16 : vector<16xf32> to vector<16x1xf32>
    %18 = vector.broadcast %17 : vector<16x1xf32> to vector<16x128xf32>
    %19 = arith.subf %15, %18 : vector<16x128xf32>
    %20 = math.exp %19 : vector<16x128xf32>
    %cst_8 = arith.constant dense<0.000000e+00> : vector<16xf32>
    %21 = vector.multi_reduction <add>, %20, %cst_8 [1] : vector<16x128xf32> to vector<16xf32>
    %22 = vector.shape_cast %21 : vector<16xf32> to vector<16x1xf32>
    %23 = math.log %22 : vector<16x1xf32>
    %24 = vector.broadcast %23 : vector<16x1xf32> to vector<16x128xf32>
    %25 = arith.subf %19, %24 : vector<16x128xf32>
    %c0_9 = arith.constant 0 : index
    %c0_10 = arith.constant 0 : index
    %26 = vector.load %arg4[%c0_9, %c0_10] : memref<16x128xf32, #tpu.memory_space<vmem>>, vector<16x128xf32>
    tpu.vector_store %arg4[%c0_9, %c0_10], %25 {strides = array<i32>} : memref<16x128xf32, #tpu.memory_space<vmem>>, vector<16x128xf32>,
    return
  }
  func.func @transform_0(%arg0: i32) -> (i32, i32) {
    %c0_i32 = arith.constant 0 : i32
    %c0_i32_0 = arith.constant 0 : i32
    return %arg0, %c0_i32 : i32, i32
  }
  func.func @transform_1(%arg0: i32) -> (i32, i32) {
    %c0_i32 = arith.constant 0 : i32
    %c0_i32_0 = arith.constant 0 : i32
    %c0_i32_1 = arith.constant 0 : i32
    return %c0_i32, %c0_i32_0 : i32, i32
  }
  func.func @transform_2(%arg0: i32) -> (i32, i32) {
    %c0_i32 = arith.constant 0 : i32
    %c0_i32_0 = arith.constant 0 : i32
    %c0_i32_1 = arith.constant 0 : i32
    return %c0_i32, %c0_i32_0 : i32, i32
  }
  func.func @transform_3(%arg0: i32) -> (i32, i32) {
    %c0_i32 = arith.constant 0 : i32
    %c0_i32_0 = arith.constant 0 : i32
    return %arg0, %c0_i32 : i32, i32
  }
}

</mosaic_0001>

<llo_original>
// kernel: tpu_custom_call.1
$region0: #{tpu_custom_call.1}
  #allocation0 [shape = 'u32[]', space=smem, size = 0x4, offset = 0x4, fixed_abs, tag = 'smem constant byte address 0x4 - core index']
  #allocation1 [shape = 'u32[144,128]{1,0:T(1,128)}', space=vmem, size = 0x12000, scoped, tag = 'internal scratch']
  %s0 = inlined_call_operand.hbm [shape: f32[16,128], index: 0, kind: input, shape index: {}]
  %s1 = inlined_call_operand.hbm [shape: bf16[128,128], index: 1, kind: input, shape index: {}]
  %s2 = inlined_call_operand.vmem [shape: f32[1,128], index: 2, kind: input, shape index: {}]
  %s3 = inlined_call_operand.hbm [shape: f32[16,128], index: 3, kind: output, shape index: {}]
  %s4 = sld [smem:[#allocation0]]
  $region30: #{tpu_custom_call.1} parent=0
    _
  %s6 = ssub.s32 1, %s4
  %s7 = scalar_select 0, %s6, %s4
  $region1: #{tpu_custom_call.1} parent=0
    #allocation2 [shape = 'u8[8192]{0}', space=vmem, size = 0x2000, scoped, tag = 'input window, operand 0, single buffered']
    #allocation3 [shape = 's32[1]{0}', space=sflag, size = 0x4, scoped, tag = 'scoped memory for tpu_custom_call.1']
    #allocation4 [shape = 's32[1]{0}', space=sflag, size = 0x4, scoped, tag = 'scoped memory for tpu_custom_call.1']
    #allocation5 [shape = 'u8[32768]{0}', space=vmem, size = 0x8000, scoped, tag = 'input window, operand 1, single buffered']
    #allocation6 [shape = 's32[1]{0}', space=sflag, size = 0x4, scoped, tag = 'scoped memory for tpu_custom_call.1']
    #allocation7 [shape = 'u8[8192]{0}', space=vmem, size = 0x2000, scoped, tag = 'output window, operand 0, single buffered']
    %8 = vsyncpa [#allocation3], 0
    %9 = vsyncpa [#allocation6], 0
    %10 = vsyncpa [#allocation4], 0
    // Predicated region
    $region2: #{tpu_custom_call.1} parent=1 // pred_check
      _
    $region3: #{tpu_custom_call.1} parent=1 // pred_check_branch
      %12 = sbr.rel (0) target = $region5
    $region4: #{tpu_custom_call.1} parent=1 // pred_region
      %s14 = ssub.s32 256, 256
      %15 = vsyncadd [#allocation3], %s14
      %s16 = sshll.u32 [#allocation2], 4
      %s17 = int_to_ptr.vmem [resolvable:$true] %s16
      %22 = dma.hbm_to_vmem [thread:$0]  %s0, 256, %s17, [#allocation3], 128, 128, 8
    $region5: #{tpu_custom_call.1} parent=1 // pred_fallthru
      _
    // Predicated region
    $region6: #{tpu_custom_call.1} parent=1 // pred_check
      _
    $region7: #{tpu_custom_call.1} parent=1 // pred_check_branch
      %24 = sbr.rel (0) target = $region9
    $region8: #{tpu_custom_call.1} parent=1 // pred_region
      %s26 = ssub.s32 1024, 1024
      %27 = vsyncadd [#allocation6], %s26
      %s28 = sshll.u32 [#allocation5], 4
      %s29 = int_to_ptr.vmem [resolvable:$true] %s28
      %34 = dma.hbm_to_vmem [thread:$0]  %s1, 1024, %s29, [#allocation6], 64, 64, 4
    $region9: #{tpu_custom_call.1} parent=1 // pred_fallthru
      _
    // Predicated region
    $region10: #{tpu_custom_call.1} parent=1 // pred_check
      _
    $region11: #{tpu_custom_call.1} parent=1 // pred_check_branch
      %36 = sbr.rel (0) target = $region13
    $region12: #{tpu_custom_call.1} parent=1 // pred_region
      _
    $region13: #{tpu_custom_call.1} parent=1 // pred_fallthru
      _
    // Predicated region
    $region14: #{tpu_custom_call.1} parent=1 // pred_check
      _
    $region15: #{tpu_custom_call.1} parent=1 // pred_check_branch
      %38 = sbr.rel (0) target = $region17
    $region16: #{tpu_custom_call.1} parent=1 // pred_region
      %39 = dma.done [#allocation3], 256
    $region17: #{tpu_custom_call.1} parent=1 // pred_fallthru
      _
    // Predicated region
    $region18: #{tpu_custom_call.1} parent=1 // pred_check
      _
    $region19: #{tpu_custom_call.1} parent=1 // pred_check_branch
      %41 = sbr.rel (0) target = $region21
    $region20: #{tpu_custom_call.1} parent=1 // pred_region
      %42 = dma.done [#allocation6], 1024
    $region21: #{tpu_custom_call.1} parent=1 // pred_fallthru
      _
    %v44 = vld [vmem:[#allocation2] sm:$0xff]
    %v45 = vld [vmem:[#allocation2 + $0x8] sm:$0xff]
    %v46 = vld [vmem:[#allocation5] sm:$0xf]
    %v47 = vld [vmem:[#allocation5 + $0x4] sm:$0xf]
    %v48 = vld [vmem:[#allocation5 + $0x8] sm:$0xf]
    %v49 = vld [vmem:[#allocation5 + $0xc] sm:$0xf]
    %v50 = vld [vmem:[#allocation5 + $0x10] sm:$0xf]
    %v51 = vld [vmem:[#allocation5 + $0x14] sm:$0xf]
    %v52 = vld [vmem:[#allocation5 + $0x18] sm:$0xf]
    %v53 = vld [vmem:[#allocation5 + $0x1c] sm:$0xf]
    %v54 = vld [vmem:[#allocation5 + $0x20] sm:$0xf]
    %v55 = vld [vmem:[#allocation5 + $0x24] sm:$0xf]
    %v56 = vld [vmem:[#allocation5 + $0x28] sm:$0xf]
    %v57 = vld [vmem:[#allocation5 + $0x2c] sm:$0xf]
    %v58 = vld [vmem:[#allocation5 + $0x30] sm:$0xf]
    %v59 = vld [vmem:[#allocation5 + $0x34] sm:$0xf]
    %v60 = vld [vmem:[#allocation5 + $0x38] sm:$0xf]
    %v61 = vld [vmem:[#allocation5 + $0x3c] sm:$0xf]
    %v62 = vld [vmem:[%s2] sm:$0x1]
    %v63 = vpack.c.bf16 %v45, %v44
    %v65 = vlaneseq
    %v66 = vshrl.u32 %v65, 7
    %v67 = vsub.s32 0, %v66
    %v68 = vrot.slane %v62, %v67
    %v86 = vunpack.c.l.b16 %v46
    %v87 = vunpack.c.l.b16 %v47
    %v88 = vunpack.c.l.b16 %v48
    %v89 = vunpack.c.l.b16 %v49
    %v90 = vunpack.c.l.b16 %v50
    %v91 = vunpack.c.l.b16 %v51
    %v92 = vunpack.c.l.b16 %v52
    %v93 = vunpack.c.l.b16 %v53
    %v94 = vunpack.c.l.b16 %v54
    %v95 = vunpack.c.l.b16 %v55
    %v96 = vunpack.c.l.b16 %v56
    %v97 = vunpack.c.l.b16 %v57
    %v98 = vunpack.c.l.b16 %v58
    %v99 = vunpack.c.l.b16 %v59
    %v100 = vunpack.c.l.b16 %v60
    %v101 = vunpack.c.l.b16 %v61
    %v102 = vpack.c.b16 %v87, %v86
    %v103 = vpack.c.b16 %v89, %v88
    %v104 = vpack.c.b16 %v91, %v90
    %v105 = vpack.c.b16 %v93, %v92
    %v106 = vpack.c.b16 %v95, %v94
    %v107 = vpack.c.b16 %v97, %v96
    %v108 = vpack.c.b16 %v99, %v98
    %v109 = vpack.c.b16 %v101, %v100
    %118 = vmatprep.subr.bf16.mxu0 0
    %119 = vmatpush1.bf16.msra.mxu0 %v109
    %120 = vmatprep.subr.bf16.mxu0 0
    %121 = vmatpush1.bf16.msra.mxu0 %v108
    %122 = vmatprep.subr.bf16.mxu0 0
    %123 = vmatpush1.bf16.msra.mxu0 %v107
    %124 = vmatprep.subr.bf16.mxu0 0
    %125 = vmatpush1.bf16.msra.mxu0 %v106
    %126 = vmatprep.subr.bf16.mxu0 0
    %127 = vmatpush1.bf16.msra.mxu0 %v105
    %128 = vmatprep.subr.bf16.mxu0 0
    %129 = vmatpush1.bf16.msra.mxu0 %v104
    %130 = vmatprep.subr.bf16.mxu0 0
    %131 = vmatpush1.bf16.msra.mxu0 %v103
    %132 = vmatprep.subr.bf16.mxu0 0
    %133 = vmatpush1.bf16.msra.mxu0 %v102
    %134 = vmatprep.subr.bf16.mxu0 0
    %135 = vmatpush2.bf16.msra.mxu0 0
    %136 = vmatprep.subr.bf16.mxu0 0
    %137 = vmatpush2.bf16.msra.mxu0 0
    %138 = vmatprep.subr.bf16.mxu0 0
    %139 = vmatpush2.bf16.msra.mxu0 0
    %140 = vmatprep.subr.bf16.mxu0 0
    %141 = vmatpush2.bf16.msra.mxu0 0
    %142 = vmatprep.subr.bf16.mxu0 0
    %143 = vmatpush2.bf16.msra.mxu0 0
    %144 = vmatprep.subr.bf16.mxu0 0
    %145 = vmatpush2.bf16.msra.mxu0 0
    %146 = vmatprep.subr.bf16.mxu0 0
    %147 = vmatpush2.bf16.msra.mxu0 0
    %148 = vmatprep.subr.bf16.mxu0 0
    %149 = vmatpush2.bf16.msra.mxu0 0
    %150 = vmatprep.mubr.bf16.mxu0 0
    %151 = vmatmul.mubr.bf16.gmra.mxu0 %v63
    %v152 = vpop.f32.mrf.mxu0
    %v153 = vadd.f32 %v68, %v152
    %v154 = vpop.f32.mrf.mxu0
    %v155 = vpop.f32.mrf.mxu0
    %v156 = vadd.f32 %v68, %v155
    %v157 = vpop.f32.mrf.mxu0
    %158 = vdwg.mxu0
    %v159 = vpack.c.bf16 %v156, %v153
    %160 = vmatprep.subr.bf16.mxu0 0
    %161 = vmatpush1.bf16.msra.mxu0 %v109
    %162 = vmatprep.subr.bf16.mxu0 0
    %163 = vmatpush1.bf16.msra.mxu0 %v108
    %164 = vmatprep.subr.bf16.mxu0 0
    %165 = vmatpush1.bf16.msra.mxu0 %v107
    %166 = vmatprep.subr.bf16.mxu0 0
    %167 = vmatpush1.bf16.msra.mxu0 %v106
    %168 = vmatprep.subr.bf16.mxu0 0
    %169 = vmatpush1.bf16.msra.mxu0 %v105
    %170 = vmatprep.subr.bf16.mxu0 0
    %171 = vmatpush1.bf16.msra.mxu0 %v104
    %172 = vmatprep.subr.bf16.mxu0 0
    %173 = vmatpush1.bf16.msra.mxu0 %v103
    %174 = vmatprep.subr.bf16.mxu0 0
    %175 = vmatpush1.bf16.msra.mxu0 %v102
    %176 = vmatprep.subr.bf16.mxu0 0
    %177 = vmatpush2.bf16.msra.mxu0 0
    %178 = vmatprep.subr.bf16.mxu0 0
    %179 = vmatpush2.bf16.msra.mxu0 0
    %180 = vmatprep.subr.bf16.mxu0 0
    %181 = vmatpush2.bf16.msra.mxu0 0
    %182 = vmatprep.subr.bf16.mxu0 0
    %183 = vmatpush2.bf16.msra.mxu0 0
    %184 = vmatprep.subr.bf16.mxu0 0
    %185 = vmatpush2.bf16.msra.mxu0 0
    %186 = vmatprep.subr.bf16.mxu0 0
    %187 = vmatpush2.bf16.msra.mxu0 0
    %188 = vmatprep.subr.bf16.mxu0 0
    %189 = vmatpush2.bf16.msra.mxu0 0
    %190 = vmatprep.subr.bf16.mxu0 0
    %191 = vmatpush2.bf16.msra.mxu0 0
    %192 = vmatprep.mubr.bf16.mxu0 0
    %193 = vmatmul.mubr.bf16.gmra.mxu0 %v159
    %v194 = vpop.f32.mrf.mxu0
    %v195 = vadd.f32 %v68, %v194
    %v196 = vpop.f32.mrf.mxu0
    %v197 = vpop.f32.mrf.mxu0
    %v198 = vadd.f32 %v68, %v197
    %v199 = vpop.f32.mrf.mxu0
    %200 = vdwg.mxu0
    %v201 = vlaneseq
    %v202 = vand.u32 %v201, 127
    %vm203 = vcmp.lt.s32.totalorder %v202, 32
    %v204 = vsel %vm203, %v195, -1e+30
    %v205 = vsel %vm203, %v198, -1e+30
    %206 = vmax.xlane.f32.xlu0 %v204
    %v207 = vpop.xlane.xlu0 %206
    %208 = vmax.xlane.f32.xlu0 %v205
    %v209 = vpop.xlane.xlu0 %208
    %v210 = vsub.f32 %v204, %v207
    %v211 = vsub.f32 %v205, %v209
    %v212 = vmul.f32 %v210, 1.442695
    %v213 = vpow.pop %v212
    %v214 = vmul.f32 %v211, 1.442695
    %v215 = vpow.pop %v214
    %216 = vadd.xlane.f32.xlu0 %v213
    %v217 = vpop.xlane.xlu0 %216
    %218 = vadd.xlane.f32.xlu0 %v215
    %v219 = vpop.xlane.xlu0 %218
    %v220 = vlog2.pop %v217
    %v221 = vmul.f32 %v220, 0.6931472
    %v222 = vlog2.pop %v219
    %v223 = vmul.f32 %v222, 0.6931472
    %v224 = vsub.f32 %v210, %v221
    %v225 = vsub.f32 %v211, %v223
    %226 = vst [vmem:[#allocation7] sm:$0xff] %v224
    %227 = vst [vmem:[#allocation7 + $0x8] sm:$0xff] %v225
    // Predicated region
    $region22: #{tpu_custom_call.1} parent=1 // pred_check
      _
    $region23: #{tpu_custom_call.1} parent=1 // pred_check_branch
      %229 = sbr.rel (0) target = $region25
    $region24: #{tpu_custom_call.1} parent=1 // pred_region
      %s231 = ssub.s32 256, 256
      %232 = vsyncadd [#allocation4], %s231
      %s233 = sshll.u32 [#allocation7], 4
      %s234 = int_to_ptr.vmem [resolvable:$true] %s233
      %239 = dma.vmem_to_hbm [thread:$0]  %s234, 256, %s3, [#allocation4], 128, 128, 8
    $region25: #{tpu_custom_call.1} parent=1 // pred_fallthru
      _
    // Predicated region
    $region26: #{tpu_custom_call.1} parent=1 // pred_check
      _
    $region27: #{tpu_custom_call.1} parent=1 // pred_check_branch
      %241 = sbr.rel (0) target = $region29
    $region28: #{tpu_custom_call.1} parent=1 // pred_region
      %242 = dma.done [#allocation4], 256
    $region29: #{tpu_custom_call.1} parent=1 // pred_fallthru
      _
    %243 = vsyncpa [#allocation3], 1
    %244 = vsyncpa [#allocation6], 1
    %245 = vsyncpa [#allocation4], 1

</llo_original>
